<compile_context>
chip_gen: v7x
topology: tpu7x:2x2x1
jax: 0.10.0
libtpu: 0.0.40
codegen_flags: <defaults>
</compile_context>

<pallas_src>
import functools

import jax
import jax.numpy as jnp
from jax.experimental import pallas as pl
from jax.experimental.pallas import tpu as pltpu


def _contrastive_head_kernel(h_ref, m_ref, w_ref, b_ref, o_ref,
                             acc_ref, len_ref, cnt_ref=None, *, binary_mask):
    # h_ref : (b_tile, s_tile, D)     hidden tile (bf16 or f32)
    # m_ref : (1, 1, b_tile, s_tile)  mask tile (lane-dense, streamed with h)
    # w_ref : (1, D)                  out_proj weight (resident in VMEM)
    # b_ref : (1, 1)                  out_proj bias (SMEM scalar)
    # o_ref : (1, b_tile, 1)          output tile (written on last seq step only)
    # acc_ref / len_ref [/ cnt_ref] : (b_tile, 1) f32 accumulators (VMEM scratch)
    s_idx = pl.program_id(1)

    @pl.when(s_idx == 0)
    def _init():
        acc_ref[...] = jnp.zeros_like(acc_ref)
        len_ref[...] = jnp.zeros_like(len_ref)
        if not binary_mask:
            cnt_ref[...] = jnp.zeros_like(cnt_ref)

    # Per-token projection WITHOUT bias (bias hoisted to the finalize step).
    # VPU broadcast-multiply in the input dtype + f32-accumulated lane reduce
    # over D (no full-tile f32 upcast, no N=1 MXU matmul).
    h = h_ref[...]                                       # (bt, st, D)
    w = w_ref[...].astype(h.dtype)                       # (1, D)
    tok = jnp.sum(h * w, axis=2, dtype=jnp.float32)      # (bt, st)  f32

    m = m_ref[0, 0, :, :].astype(jnp.float32)            # (bt, st)

    if binary_mask:
        # mask in {0, 1}: masked_fill == multiply; valid-count == sum(mask).
        acc_ref[...] += jnp.sum(m * tok, axis=1, keepdims=True)
        len_ref[...] += jnp.sum(m, axis=1, keepdims=True)
    else:
        # Exact masked_fill(mask == 0, 0.0) semantics for non-binary masks.
        valid = (m != 0.0).astype(jnp.float32)
        acc_ref[...] += jnp.sum(valid * tok, axis=1, keepdims=True)
        cnt_ref[...] += jnp.sum(valid, axis=1, keepdims=True)
        len_ref[...] += jnp.sum(m, axis=1, keepdims=True)

    @pl.when(s_idx == pl.num_programs(1) - 1)
    def _finalize():
        bias = b_ref[0, 0]
        cnt = len_ref[...] if binary_mask else cnt_ref[...]
        num = acc_ref[...] + bias * cnt                  # == sum_s(valid * (h.w + b))
        # NOTE: all-padded rows (sum(mask)==0) give inf/NaN, matching PyTorch.
        o_ref[0, :, :] = jax.nn.sigmoid(num / len_ref[...]).astype(o_ref.dtype)


def _round_up(x, m):
    return (x + m - 1) // m * m


def _vmem_capacity_bytes(default=64 * 1024 * 1024):
    """Physical VMEM per core; conservative (v7x) fallback if the query fails."""
    try:
        info = pltpu.get_tpu_info()
        cap = getattr(info, "vmem_capacity_bytes", None)
        if cap:
            return int(cap)
    except Exception:
        pass
    return default


def _pick_b_tile(B):
    """Largest divisor of B that is <= min(8, B//2): keeps >= 2 steps on the
    'parallel' batch axis whenever B >= 2 so both v7x TensorCores get work."""
    cap = max(1, min(8, B // 2))
    for t in range(cap, 0, -1):
        if B % t == 0:
            return t
    return 1


def contrastive_head(hidden_states, masks, weight, bias, *,
                     b_tile=None, s_tile=None, binary_mask=True):
    """Pallas-TPU forward of ContrastiveHead.

    hidden_states : (B, S, D) float (bf16 recommended: kernel is HBM-bound)
    masks         : (B, S), 0 = padded token (binary by default; set
                    binary_mask=False for general masked_fill semantics)
    weight        : (1, D) or (D,)  nn.Linear(D, 1) weight
    bias          : scalar-ish      nn.Linear(D, 1) bias
    returns       : (B, 1) float32
    """
    hidden_states = jnp.asarray(hidden_states)
    B, S, D = hidden_states.shape
    masks = jnp.asarray(masks)
    assert masks.shape == (B, S)
    if not jnp.issubdtype(masks.dtype, jnp.floating):
        masks = masks.astype(jnp.float32)   # bool/int -> f32; bf16/f32 kept as-is
    weight = jnp.asarray(weight, jnp.float32).reshape(1, D)
    bias = jnp.asarray(bias, jnp.float32).reshape(1, 1)

    itemsize = hidden_states.dtype.itemsize
    m_itemsize = masks.dtype.itemsize
    vmem_cap = _vmem_capacity_bytes()
    # <= ~1/12 of VMEM per h buffer, hard-capped at 8 MiB: already past the
    # ~85%-of-HBM-roofline knee and leaves headroom on the 64 MiB v7x part.
    h_buf_budget = min(vmem_cap // 12, 8 * 1024 * 1024)

    if b_tile is None:
        b_tile = _pick_b_tile(B)
    assert B % b_tile == 0, "b_tile must divide B"
    # TODO(synk): for B == 1 only one TensorCore gets work; splitting the seq
    # reduction across cores (per-core partial sums + combine) is not implemented.

    if s_tile is None:
        max_rows = max(8, h_buf_budget // max(1, b_tile * D * itemsize))
        s_tile = (max_rows // 8) * 8
    s_tile = max(8, (s_tile // 8) * 8)
    s_tile = min(s_tile, _round_up(S, 8))
    s_pad = _round_up(S, s_tile)

    # Pad the seq axis so every tile is full; padded tokens carry mask == 0 and
    # contribute nothing to either sum.
    if s_pad != S:
        hidden_states = jnp.pad(hidden_states, ((0, 0), (0, s_pad - S), (0, 0)))
        masks = jnp.pad(masks, ((0, 0), (0, s_pad - S)))

    n_b, n_s = B // b_tile, s_pad // s_tile

    # Pre-tile the mask so its block is lane-dense (seq on lanes) and its
    # trailing block dims equal the full array dims -> layout-legal for any
    # (b_tile, s_tile).  Avoids the 128x lane-padding of a (.., .., 1) block.
    masks_tiled = jnp.transpose(
        masks.reshape(n_b, b_tile, n_s, s_tile), (0, 2, 1, 3))   # (n_b, n_s, bt, st)

    # --- honest VMEM accounting (lane/sublane padded, double-buffered) ---
    h_bytes = 2 * b_tile * s_tile * D * itemsize
    m_bytes = 2 * _round_up(b_tile, 8) * _round_up(s_tile, 128) * m_itemsize
    w_bytes = 2 * 8 * _round_up(D, 128) * 4
    o_bytes = 2 * _round_up(b_tile, 8) * 128 * 4
    scr_bytes = 3 * _round_up(b_tile, 8) * 128 * 4
    tmp_bytes = b_tile * s_tile * D * 4      # worst case: materialized f32 h*w temp
    needed = h_bytes + m_bytes + w_bytes + o_bytes + scr_bytes + tmp_bytes
    vmem_limit = int(min(vmem_cap, max(needed + 4 * 1024 * 1024, 16 * 1024 * 1024)))

    cost = pl.CostEstimate(
        flops=2 * B * s_pad * D + 6 * B * s_pad,
        transcendentals=B,
        bytes_accessed=(B * s_pad * D * itemsize + B * s_pad * m_itemsize
                        + D * 4 + B * 4),
    )

    kernel = functools.partial(_contrastive_head_kernel, binary_mask=binary_mask)

    scratch = [pltpu.VMEM((b_tile, 1), jnp.float32),    # acc: sum of masked proj
               pltpu.VMEM((b_tile, 1), jnp.float32)]    # len: sum_s(mask)
    if not binary_mask:
        scratch.append(pltpu.VMEM((b_tile, 1), jnp.float32))   # cnt: valid tokens

    grid_spec = pltpu.PrefetchScalarGridSpec(
        num_scalar_prefetch=0,
        grid=(n_b, n_s),
        in_specs=[
            # hidden tile: leading batch dim unconstrained, (s_tile, D) is legal.
            pl.BlockSpec((b_tile, s_tile, D), lambda b, s: (b, s, 0)),
            # mask tile: trailing block dims == full array dims -> always legal.
            pl.BlockSpec((1, 1, b_tile, s_tile), lambda b, s: (b, s, 0, 0)),
            # weight: constant index map -> DMA'd once, resident in VMEM.
            pl.BlockSpec((1, D), lambda b, s: (0, 0)),
            # bias: scalar in SMEM, untiled.
            pl.BlockSpec(memory_space=pltpu.MemorySpace.SMEM),
        ],
        # (1, b_tile, 1) block == full trailing dims of the (n_b, b_tile, 1)
        # output -> legal for any b_tile; revisited across the seq axis.
        out_specs=pl.BlockSpec((1, b_tile, 1), lambda b, s: (b, 0, 0)),
        scratch_shapes=scratch,
    )

    out = pl.pallas_call(
        kernel,
        out_shape=jax.ShapeDtypeStruct((n_b, b_tile, 1), jnp.float32),
        grid_spec=grid_spec,
        compiler_params=pltpu.CompilerParams(
            dimension_semantics=("parallel", "arbitrary"),
            vmem_limit_bytes=vmem_limit,
        ),
        cost_estimate=cost,
    )(hidden_states, masks_tiled, weight, bias)

    return out.reshape(B, 1)


if __name__ == "__main__":
    # Small shapes, but chosen so the grid is (2 batch tiles x 3 seq tiles),
    # exercising megacore batch split, seq-axis accumulation and finalize.
    B, S, D = 4, 192, 128

    key = jax.random.PRNGKey(0)
    k_h, k_w, k_b = jax.random.split(key, 3)

    hidden_states = jax.random.normal(k_h, (B, S, D), dtype=jnp.float32)

    # Binary padding mask with varying valid lengths (last row: single token).
    lens = jnp.array([S, 127, 64, 1], dtype=jnp.int32)
    masks = (jnp.arange(S)[None, :] < lens[:, None]).astype(jnp.float32)

    # nn.Linear(inner_dim, 1)-style init: uniform(-1/sqrt(D), 1/sqrt(D))
    bound = 1.0 / float(D) ** 0.5
    weight = jax.random.uniform(k_w, (1, D), jnp.float32, -bound, bound)
    bias = jax.random.uniform(k_b, (1, 1), jnp.float32, -bound, bound)

    # Pure-JAX reference (matches the PyTorch forward).
    proj_ref = hidden_states @ weight[0] + bias[0, 0]            # (B, S)
    masked_ref = jnp.where(masks == 0.0, 0.0, proj_ref)
    ref = jax.nn.sigmoid(
        jnp.sum(masked_ref, axis=1, keepdims=True)
        / jnp.sum(masks, axis=1, keepdims=True)
    )

    # f32 path (tight tolerance), s_tile forced to 64 -> 3 seq steps.
    out = contrastive_head(hidden_states, masks, weight, bias, s_tile=64)
    jax.block_until_ready(out)
    assert out.shape == (B, 1)
    assert jnp.allclose(out, ref, atol=1e-5, rtol=1e-5), (out, ref)

    # bf16 storage path (recommended in production: halves HBM traffic); the
    # multiply runs in bf16 with f32 accumulation, so tolerance is loosened.
    out_bf16 = contrastive_head(hidden_states.astype(jnp.bfloat16), masks,
                                weight, bias, s_tile=64)
    jax.block_until_ready(out_bf16)
    assert jnp.allclose(out_bf16, ref, atol=2e-2, rtol=1e-2), (out_bf16, ref)

    # General (non-binary-safe) masked_fill path; identical result for 0/1 masks.
    out_gen = contrastive_head(hidden_states, masks, weight, bias,
                               s_tile=64, binary_mask=False)
    jax.block_until_ready(out_gen)
    assert jnp.allclose(out_gen, ref, atol=1e-5, rtol=1e-5), (out_gen, ref)

    print("KERNEL_OK")
</pallas_src>

<mosaic_0001>
module attributes {stable_mosaic.version = 11 : i64} {
  func.func @_contrastive_head_kernel(%arg0: i32, %arg1: i32, %arg2: memref<2x64x128xf32, #tpu.memory_space<vmem>>, %arg3: memref<1x1x2x64xf32, #tpu.memory_space<vmem>>, %arg4: memref<1x128xf32, #tpu.memory_space<vmem>>, %arg5: memref<1x1xf32, #tpu.memory_space<smem>>, %arg6: memref<1x2x1xf32, #tpu.memory_space<vmem>>, %arg7: memref<2x1xf32, #tpu.memory_space<vmem>>, %arg8: memref<2x1xf32, #tpu.memory_space<vmem>>) attributes {dimension_semantics = [#tpu.dimension_semantics<parallel>, #tpu.dimension_semantics<arbitrary>], iteration_bounds = array<i64: 2, 3>, scalar_prefetch = 0 : i64, scratch_operands = 2 : i64, tpu.core_type = #tpu.core_type<tc>, window_params = [{transform_indices = @transform_0, window_bounds = array<i64: 2, 64, 128>}, {transform_indices = @transform_1, window_bounds = array<i64: 1, 1, 2, 64>}, {pipeline_mode = #tpu.pipeline_mode<synchronous>, transform_indices = @transform_2, window_bounds = array<i64: 1, 128>}, {transform_indices = @transform_3, window_bounds = array<i64: 1, 1>}, {transform_indices = @transform_4, window_bounds = array<i64: 1, 2, 1>}]} {
    %c0_i32 = arith.constant 0 : i32
    %0 = arith.cmpi eq, %arg1, %c0_i32 : i32
    %1 = arith.extui %0 : i1 to i32
    %c0_i32_0 = arith.constant 0 : i32
    %2 = arith.cmpi ne, %1, %c0_i32_0 : i32
    scf.if %2 {
      %cst_20 = arith.constant 0.000000e+00 : f32
      %25 = vector.broadcast %cst_20 : f32 to vector<2x1xf32>
      %c0_21 = arith.constant 0 : index
      %c0_22 = arith.constant 0 : index
      %26 = vector.load %arg7[%c0_21, %c0_22] : memref<2x1xf32, #tpu.memory_space<vmem>>, vector<2x1xf32>
      tpu.vector_store %arg7[%c0_21, %c0_22], %25 {strides = array<i32>} : memref<2x1xf32, #tpu.memory_space<vmem>>, vector<2x1xf32>,
      %cst_23 = arith.constant 0.000000e+00 : f32
      %27 = vector.broadcast %cst_23 : f32 to vector<2x1xf32>
      %c0_24 = arith.constant 0 : index
      %c0_25 = arith.constant 0 : index
      %28 = vector.load %arg8[%c0_24, %c0_25] : memref<2x1xf32, #tpu.memory_space<vmem>>, vector<2x1xf32>
      tpu.vector_store %arg8[%c0_24, %c0_25], %27 {strides = array<i32>} : memref<2x1xf32, #tpu.memory_space<vmem>>, vector<2x1xf32>,
    } else {
    }
    %c0 = arith.constant 0 : index
    %c0_1 = arith.constant 0 : index
    %c0_2 = arith.constant 0 : index
    %3 = vector.load %arg2[%c0, %c0_1, %c0_2] : memref<2x64x128xf32, #tpu.memory_space<vmem>>, vector<2x64x128xf32>
    %c0_3 = arith.constant 0 : index
    %c0_4 = arith.constant 0 : index
    %4 = vector.load %arg4[%c0_3, %c0_4] : memref<1x128xf32, #tpu.memory_space<vmem>>, vector<1x128xf32>
    %5 = vector.shape_cast %4 : vector<1x128xf32> to vector<1x1x128xf32>
    %6 = vector.broadcast %5 : vector<1x1x128xf32> to vector<2x64x128xf32>
    %7 = arith.mulf %3, %6 : vector<2x64x128xf32>
    %cst = arith.constant dense<0.000000e+00> : vector<2x64xf32>
    %8 = vector.multi_reduction <add>, %7, %cst [2] : vector<2x64x128xf32> to vector<2x64xf32>
    %c0_5 = arith.constant 0 : index
    %c0_6 = arith.constant 0 : index
    %c0_7 = arith.constant 0 : index
    %c0_8 = arith.constant 0 : index
    %9 = vector.load %arg3[%c0_5, %c0_6, %c0_7, %c0_8] : memref<1x1x2x64xf32, #tpu.memory_space<vmem>>, vector<1x1x2x64xf32>
    %10 = vector.shape_cast %9 : vector<1x1x2x64xf32> to vector<2x64xf32>
    %c0_9 = arith.constant 0 : index
    %c0_10 = arith.constant 0 : index
    %11 = vector.load %arg7[%c0_9, %c0_10] : memref<2x1xf32, #tpu.memory_space<vmem>>, vector<2x1xf32>
    %12 = arith.mulf %10, %8 : vector<2x64xf32>
    %cst_11 = arith.constant dense<0.000000e+00> : vector<2xf32>
    %13 = vector.multi_reduction <add>, %12, %cst_11 [1] : vector<2x64xf32> to vector<2xf32>
    %14 = vector.shape_cast %13 : vector<2xf32> to vector<2x1xf32>
    %15 = arith.addf %11, %14 : vector<2x1xf32>
    %c0_12 = arith.constant 0 : index
    %c0_13 = arith.constant 0 : index
    %16 = vector.load %arg7[%c0_12, %c0_13] : memref<2x1xf32, #tpu.memory_space<vmem>>, vector<2x1xf32>
    tpu.vector_store %arg7[%c0_12, %c0_13], %15 {strides = array<i32>} : memref<2x1xf32, #tpu.memory_space<vmem>>, vector<2x1xf32>,
    %c0_14 = arith.constant 0 : index
    %c0_15 = arith.constant 0 : index
    %17 = vector.load %arg8[%c0_14, %c0_15] : memref<2x1xf32, #tpu.memory_space<vmem>>, vector<2x1xf32>
    %cst_16 = arith.constant dense<0.000000e+00> : vector<2xf32>
    %18 = vector.multi_reduction <add>, %10, %cst_16 [1] : vector<2x64xf32> to vector<2xf32>
    %19 = vector.shape_cast %18 : vector<2xf32> to vector<2x1xf32>
    %20 = arith.addf %17, %19 : vector<2x1xf32>
    %c0_17 = arith.constant 0 : index
    %c0_18 = arith.constant 0 : index
    %21 = vector.load %arg8[%c0_17, %c0_18] : memref<2x1xf32, #tpu.memory_space<vmem>>, vector<2x1xf32>
    tpu.vector_store %arg8[%c0_17, %c0_18], %20 {strides = array<i32>} : memref<2x1xf32, #tpu.memory_space<vmem>>, vector<2x1xf32>,
    %c2_i32 = arith.constant 2 : i32
    %22 = arith.cmpi eq, %arg1, %c2_i32 : i32
    %23 = arith.extui %22 : i1 to i32
    %c0_i32_19 = arith.constant 0 : i32
    %24 = arith.cmpi ne, %23, %c0_i32_19 : i32
    scf.if %24 {
      %c0_20 = arith.constant 0 : index
      %c0_21 = arith.constant 0 : index
      %25 = memref.load %arg5[%c0_20, %c0_21] : memref<1x1xf32, #tpu.memory_space<smem>>
      %c0_22 = arith.constant 0 : index
      %c0_23 = arith.constant 0 : index
      %26 = vector.load %arg8[%c0_22, %c0_23] : memref<2x1xf32, #tpu.memory_space<vmem>>, vector<2x1xf32>
      %c0_24 = arith.constant 0 : index
      %c0_25 = arith.constant 0 : index
      %27 = vector.load %arg7[%c0_24, %c0_25] : memref<2x1xf32, #tpu.memory_space<vmem>>, vector<2x1xf32>
      %28 = vector.broadcast %25 : f32 to vector<2x1xf32>
      %29 = arith.mulf %28, %26 : vector<2x1xf32>
      %30 = arith.addf %27, %29 : vector<2x1xf32>
      %c0_26 = arith.constant 0 : index
      %c0_27 = arith.constant 0 : index
      %31 = vector.load %arg8[%c0_26, %c0_27] : memref<2x1xf32, #tpu.memory_space<vmem>>, vector<2x1xf32>
      %32 = arith.divf %30, %31 : vector<2x1xf32>
      %33 = arith.negf %32 : vector<2x1xf32>
      %34 = math.exp %33 : vector<2x1xf32>
      %cst_28 = arith.constant 1.000000e+00 : f32
      %35 = vector.broadcast %cst_28 : f32 to vector<2x1xf32>
      %36 = arith.addf %35, %34 : vector<2x1xf32>
      %37 = arith.divf %35, %36 : vector<2x1xf32>
      %c0_29 = arith.constant 0 : index
      %c0_30 = arith.constant 0 : index
      %c0_31 = arith.constant 0 : index
      %38 = vector.load %arg6[%c0_29, %c0_30, %c0_31] : memref<1x2x1xf32, #tpu.memory_space<vmem>>, vector<1x2x1xf32>
      %39 = vector.shape_cast %38 : vector<1x2x1xf32> to vector<2x1xf32>
      %40 = vector.shape_cast %37 : vector<2x1xf32> to vector<1x2x1xf32>
      tpu.vector_store %arg6[%c0_29, %c0_30, %c0_31], %40 {strides = array<i32>} : memref<1x2x1xf32, #tpu.memory_space<vmem>>, vector<1x2x1xf32>,
    } else {
    }
    return
  }
  func.func @transform_0(%arg0: i32, %arg1: i32) -> (i32, i32, i32) {
    %c0_i32 = arith.constant 0 : i32
    %c0_i32_0 = arith.constant 0 : i32
    return %arg0, %arg1, %c0_i32 : i32, i32, i32
  }
  func.func @transform_1(%arg0: i32, %arg1: i32) -> (i32, i32, i32, i32) {
    %c0_i32 = arith.constant 0 : i32
    %c0_i32_0 = arith.constant 0 : i32
    %c0_i32_1 = arith.constant 0 : i32
    return %arg0, %arg1, %c0_i32, %c0_i32_0 : i32, i32, i32, i32
  }
  func.func @transform_2(%arg0: i32, %arg1: i32) -> (i32, i32) {
    %c0_i32 = arith.constant 0 : i32
    %c0_i32_0 = arith.constant 0 : i32
    %c0_i32_1 = arith.constant 0 : i32
    return %c0_i32, %c0_i32_0 : i32, i32
  }
  func.func @transform_3(%arg0: i32, %arg1: i32) -> (i32, i32) {
    %c0_i32 = arith.constant 0 : i32
    %c0_i32_0 = arith.constant 0 : i32
    %c0_i32_1 = arith.constant 0 : i32
    return %c0_i32, %c0_i32_0 : i32, i32
  }
  func.func @transform_4(%arg0: i32, %arg1: i32) -> (i32, i32, i32) {
    %c0_i32 = arith.constant 0 : i32
    %c0_i32_0 = arith.constant 0 : i32
    %c0_i32_1 = arith.constant 0 : i32
    return %arg0, %c0_i32, %c0_i32_0 : i32, i32, i32
  }
}

</mosaic_0001>

<llo_original>
// kernel: tpu_custom_call.1
$region0: #{tpu_custom_call.1}
  #allocation0 [shape = 'u32[]', space=smem, size = 0x4, offset = 0x4, fixed_abs, tag = 'smem constant byte address 0x4 - core index']
  #allocation1 [shape = 'u32[144,128]{1,0:T(1,128)}', space=vmem, size = 0x12000, scoped, tag = 'internal scratch']
  #allocation2 [shape = 'f32[2,1]{1,0:T(2,128)}', space=vmem, size = 0x400, scoped, tag = 'scratch operand']
  #allocation3 [shape = 'f32[2,1]{1,0:T(2,128)}', space=vmem, size = 0x400, scoped, tag = 'scratch operand']
  #allocation4 [shape = 'f32[1,1]{1,0:T(1,128)S(6)}', space=smem, size = 0x200, scoped, tag = 'scoped memory for tpu_custom_call.1']
  #allocation9 [shape = 's32[]', space=sflag, size = 0x4, offset = 0, fixed_abs, tag = 'sflag constant byte address 0x0 - dummy sync flag']
  %s0 = inlined_call_operand.hbm [shape: f32[4,192,128], index: 0, kind: input, shape index: {}]
  %s1 = inlined_call_operand.hbm [shape: f32[2,3,2,64], index: 1, kind: input, shape index: {}]
  %s2 = inlined_call_operand.vmem [shape: f32[1,128], index: 2, kind: input, shape index: {}]
  %s3 = inlined_call_operand.<no memory space> [shape: f32[1,1], index: 3, kind: input, shape index: {}]
  %s4 = inlined_call_operand.vmem [shape: f32[2,2,1], index: 4, kind: output, shape index: {}]
  %s5 = sld [smem:[#allocation0]]
  $region65: #{tpu_custom_call.1} parent=0
    _
  %s7 = ssub.s32 1, %s5
  %s8 = scalar_select 0, %s7, %s5
  %9 = sst [smem:[#allocation4]] %s3
  $region1: #{tpu_custom_call.1} parent=0
    #allocation5 [shape = 'u8[131072]{0}', space=vmem, size = 0x20000, scoped, tag = 'input window, operand 0']
    #allocation6 [shape = 's32[2]{0}', space=sflag, size = 0x8, scoped, tag = 'scoped memory for tpu_custom_call.1']
    #allocation7 [shape = 'u8[2048]{0}', space=vmem, size = 0x800, scoped, tag = 'input window, operand 1']
    #allocation8 [shape = 's32[2]{0}', space=sflag, size = 0x8, scoped, tag = 'scoped memory for tpu_custom_call.1']
    %10 = vsyncpa [#allocation6], 0
    %s11 = scalar_lea.sflag [#allocation6], 1
    %12 = vsyncpa %s11, 0
    %13 = vsyncpa [#allocation8], 0
    %s14 = scalar_lea.sflag [#allocation8], 1
    %15 = vsyncpa %s14, 0
    loop: start=0, step=1, limit=8
    $region2: #{tpu_custom_call.1} parent=1 // loop_pre_header
      _
    $region3: #{tpu_custom_call.1} parent=1 // loop_header
      %s17 = sphi 0, %s21
      %p18 = scmp.ge.s32.totalorder %s17, 8
      %s24 = sphi 0, %s36
      %s25 = sphi 0, %s32
      %s26 = sphi 0, %s24
      %s27 = sphi 0, %s25
      %s28 = sphi 0, %s26
      %s29 = sphi 0, %s27
      %s41 = sphi 0, %s43
      %s44 = sphi 0, %s41
      %s45 = sphi 0, %s44
      %s61 = sphi 0, %s45
      %s69 = sphi 0, %s71
      %s72 = sphi 0, %s69
      %s73 = sphi 0, %s72
      %s89 = sphi 0, %s73
      %s93 = sphi 0, %s93
      %s95 = sphi 0, %s93
      %s96 = sphi 0, %s95
      %s110 = sphi 0, %s96
      %s114 = sphi 0, %s114
      %s116 = sphi 0, %s114
      %s117 = sphi 0, %s116
      %s131 = sphi 0, %s117
      %s137 = sphi 0, %s139
      %s140 = sphi 0, %s137
      %s141 = sphi 0, %s140
      %s157 = sphi 0, %s141
    $region4: #{tpu_custom_call.1} parent=1 // loop_header_branch
      %20 = sbr.rel (%p18) target = $region8
    $region5: #{tpu_custom_call.1} parent=1 // loop_body
      %s22 = ssub.s32 %s17, 1
      %s23 = ssub.s32 %s17, 2
      %s30 = sadd.s32 1, %s25
      %p31 = scmp.ge.s32.totalorder %s30, 3
      %s32 = scalar_select %p31, 0, %s30
      %s33 = sadd.s32 1, %s24
      %s34 = scalar_select %p31, %s33, %s24
      %p35 = scmp.ge.s32.totalorder %s34, 2
      %s36 = scalar_select %p35, 0, %s34
      %s37 = ssub.s32 %s24, %s36
      %s38 = ssub.s32 %s25, %s32
      %s39 = sor.u32 %s37, %s38
      %p40 = scmp.eq.s32.totalorder %s39, 0
      %s42 = sadd.s32 %s41, 1
      %s43 = scalar_select %p40, %s41, %s42
      %p46 = pneg %p40
      %p47 = scmp.eq.s32.totalorder %s17, 5
      %p48 = por %p46, %p47
      %p49 = scmp.ne.s32.totalorder %s41, %s44
      %p50 = scmp.eq.s32.totalorder %s17, 0
      %p51 = por %p49, %p50
      %p52 = scmp.ne.s32.totalorder %s41, %s44
      %p53 = scmp.eq.s32.totalorder %s22, 5
      %p54 = por %p52, %p53
      %p55 = scmp.ne.s32.totalorder %s44, %s45
      %p56 = scmp.eq.s32.totalorder %s22, 0
      %p57 = por %p55, %p56
      %p58 = scmp.ne.s32.totalorder %s44, %s45
      %p59 = scmp.eq.s32.totalorder %s23, 5
      %p60 = por %p58, %p59
      %p62 = scmp.ne.s32.totalorder %s45, %s61
      %p63 = scmp.eq.s32.totalorder %s23, 0
      %p64 = por %p62, %p63
      %s65 = ssub.s32 %s24, %s36
      %s66 = ssub.s32 %s25, %s32
      %s67 = sor.u32 %s65, %s66
      %p68 = scmp.eq.s32.totalorder %s67, 0
      %s70 = sadd.s32 %s69, 1
      %s71 = scalar_select %p68, %s69, %s70
      %p74 = pneg %p68
      %p75 = scmp.eq.s32.totalorder %s17, 5
      %p76 = por %p74, %p75
      %p77 = scmp.ne.s32.totalorder %s69, %s72
      %p78 = scmp.eq.s32.totalorder %s17, 0
      %p79 = por %p77, %p78
      %p80 = scmp.ne.s32.totalorder %s69, %s72
      %p81 = scmp.eq.s32.totalorder %s22, 5
      %p82 = por %p80, %p81
      %p83 = scmp.ne.s32.totalorder %s72, %s73
      %p84 = scmp.eq.s32.totalorder %s22, 0
      %p85 = por %p83, %p84
      %p86 = scmp.ne.s32.totalorder %s72, %s73
      %p87 = scmp.eq.s32.totalorder %s23, 5
      %p88 = por %p86, %p87
      %p90 = scmp.ne.s32.totalorder %s73, %s89
      %p91 = scmp.eq.s32.totalorder %s23, 0
      %p92 = por %p90, %p91
      %s94 = sadd.s32 %s93, 1
      %p97 = scmp.eq.s32.totalorder %s17, 5
      %p98 = scmp.ne.s32.totalorder %s93, %s95
      %p99 = scmp.eq.s32.totalorder %s17, 0
      %p100 = por %p98, %p99
      %p101 = scmp.ne.s32.totalorder %s93, %s95
      %p102 = scmp.eq.s32.totalorder %s22, 5
      %p103 = por %p101, %p102
      %p104 = scmp.ne.s32.totalorder %s95, %s96
      %p105 = scmp.eq.s32.totalorder %s22, 0
      %p106 = por %p104, %p105
      %p107 = scmp.ne.s32.totalorder %s95, %s96
      %p108 = scmp.eq.s32.totalorder %s23, 5
      %p109 = por %p107, %p108
      %p111 = scmp.ne.s32.totalorder %s96, %s110
      %p112 = scmp.eq.s32.totalorder %s23, 0
      %p113 = por %p111, %p112
      %s115 = sadd.s32 %s114, 1
      %p118 = scmp.eq.s32.totalorder %s17, 5
      %p119 = scmp.ne.s32.totalorder %s114, %s116
      %p120 = scmp.eq.s32.totalorder %s17, 0
      %p121 = por %p119, %p120
      %p122 = scmp.ne.s32.totalorder %s114, %s116
      %p123 = scmp.eq.s32.totalorder %s22, 5
      %p124 = por %p122, %p123
      %p125 = scmp.ne.s32.totalorder %s116, %s117
      %p126 = scmp.eq.s32.totalorder %s22, 0
      %p127 = por %p125, %p126
      %p128 = scmp.ne.s32.totalorder %s116, %s117
      %p129 = scmp.eq.s32.totalorder %s23, 5
      %p130 = por %p128, %p129
      %p132 = scmp.ne.s32.totalorder %s117, %s131
      %p133 = scmp.eq.s32.totalorder %s23, 0
      %p134 = por %p132, %p133
      %s135 = ssub.s32 %s24, %s36
      %p136 = scmp.eq.s32.totalorder %s135, 0
      %s138 = sadd.s32 %s137, 1
      %s139 = scalar_select %p136, %s137, %s138
      %p142 = pneg %p136
      %p143 = scmp.eq.s32.totalorder %s17, 5
      %p144 = por %p142, %p143
      %p145 = scmp.ne.s32.totalorder %s137, %s140
      %p146 = scmp.eq.s32.totalorder %s17, 0
      %p147 = por %p145, %p146
      %p148 = scmp.ne.s32.totalorder %s137, %s140
      %p149 = scmp.eq.s32.totalorder %s22, 5
      %p150 = por %p148, %p149
      %p151 = scmp.ne.s32.totalorder %s140, %s141
      %p152 = scmp.eq.s32.totalorder %s22, 0
      %p153 = por %p151, %p152
      %p154 = scmp.ne.s32.totalorder %s140, %s141
      %p155 = scmp.eq.s32.totalorder %s23, 5
      %p156 = por %p154, %p155
      %p158 = scmp.ne.s32.totalorder %s141, %s157
      %p159 = scmp.eq.s32.totalorder %s23, 0
      %p160 = por %p158, %p159
      %p161 = scmp.le.s32.totalorder 1, %s17
      %p162 = scmp.lt.s32.totalorder %s17, 7
      %p163 = pnand %p161, %p162
      %p164 = pneg %p163
      // Predicated region
      $region9: #{tpu_custom_call.1} parent=5 // pred_check
        _
      $region10: #{tpu_custom_call.1} parent=5 // pred_check_branch
        %166 = sbr.rel (%p163) target = $region12
      $region11: #{tpu_custom_call.1} parent=5 // pred_region
        %s167 = ssub.s32 %s17, 1
        // Predicated region
        $region13: #{tpu_custom_call.1} parent=11 // pred_check
          %p168 = pneg %p106
        $region14: #{tpu_custom_call.1} parent=11 // pred_check_branch
          %170 = sbr.rel (%p168) target = $region16
        $region15: #{tpu_custom_call.1} parent=11 // pred_region
          _
        $region16: #{tpu_custom_call.1} parent=11 // pred_fallthru
          _
        // Predicated region
        $region17: #{tpu_custom_call.1} parent=11 // pred_check
          %p171 = pneg %p127
        $region18: #{tpu_custom_call.1} parent=11 // pred_check_branch
          %173 = sbr.rel (%p171) target = $region20
        $region19: #{tpu_custom_call.1} parent=11 // pred_region
          _
        $region20: #{tpu_custom_call.1} parent=11 // pred_fallthru
          _
      $region12: #{tpu_custom_call.1} parent=5 // pred_fallthru
        _
      %p174 = scmp.lt.s32.totalorder %s17, 6
      // Predicated region
      $region21: #{tpu_custom_call.1} parent=5 // pred_check
        %p175 = pneg %p174
      $region22: #{tpu_custom_call.1} parent=5 // pred_check_branch
        %177 = sbr.rel (%p175) target = $region24
      $region23: #{tpu_custom_call.1} parent=5 // pred_region
        // Predicated region
        $region25: #{tpu_custom_call.1} parent=23 // pred_check
          %p178 = pneg %p51
        $region26: #{tpu_custom_call.1} parent=23 // pred_check_branch
          %180 = sbr.rel (%p178) target = $region28
        $region27: #{tpu_custom_call.1} parent=23 // pred_region
          #allocation10 [shape = 'u32[6]{0}', space=smem, size = 0x18, scoped, tag = 'DMA stride descriptor']
          %s181 = sand.u32 %s41, 1
          %s182 = scalar_lea.sflag [#allocation6], %s181
          %s183 = sand.u32 %s41, 1
          %s184 = smul.addr %s183, 128
          %s185 = scalar_lea.vmem [#allocation5], %s184
          %s186 = smul.u32 2, %s24
          %s187 = smul.u32 8, %s25
          %s189 = ssub.s32 2048, 2048
          %190 = vsyncadd %s182, %s189
          %s191 = smul.addr %s186, 24
          %s192 = sadd.s32 %s187, %s191
          %s193 = smul.addr %s192, 128
          %s194 = scalar_lea.hbm %s0, %s193
          %s196 = sshll.u32 1, 14
          %s197 = sxor.u32 4294967295, %s196
          %s199 = sld [smem:[#allocation0]]
          %s200 = sadd.s32 2, %s199
          %s202 = sshll.u32 7, 26
          %s203 = sxor.u32 4294967295, %s202
          %s204 = sand.u32 0, %s203
          %s205 = sshll.u32 %s200, 26
          %s206 = sor.u32 %s204, %s205
          %s207 = sshll.u32 %s185, 4
          %s208 = int_to_ptr.vmem [resolvable:$true] %s207
          %214 = sst [smem:[#allocation10]] 3072
          %s215 = scalar_lea.smem [#allocation10], 1
          %216 = sst [smem:[%s215]] 1024
          %s217 = scalar_lea.smem [#allocation10], 2
          %218 = sst [smem:[%s217]] 8
          %s219 = scalar_lea.smem [#allocation10], 3
          %220 = sst [smem:[%s219]] 128
          %s221 = scalar_lea.smem [#allocation10], 4
          %222 = sst [smem:[%s221]] 128
          %s223 = scalar_lea.smem [#allocation10], 5
          %224 = sst [smem:[%s223]] 8
          %226 = dma.general %s194, 2048, %s208, %s182, [#allocation9], [#allocation10], %s206, 0
        $region28: #{tpu_custom_call.1} parent=23 // pred_fallthru
          _
        // Predicated region
        $region29: #{tpu_custom_call.1} parent=23 // pred_check
          %p227 = pneg %p79
        $region30: #{tpu_custom_call.1} parent=23 // pred_check_branch
          %229 = sbr.rel (%p227) target = $region32
        $region31: #{tpu_custom_call.1} parent=23 // pred_region
          %s230 = sand.u32 %s69, 1
          %s231 = scalar_lea.sflag [#allocation8], %s230
          %s232 = sand.u32 %s69, 1
          %s233 = smul.addr %s232, 2
          %s234 = scalar_lea.vmem [#allocation7], %s233
          %s236 = ssub.s32 32, 32
          %237 = vsyncadd %s231, %s236
          %s238 = smul.addr %s24, 3
          %s239 = sadd.s32 %s25, %s238
          %s240 = smul.addr %s239, 32
          %s241 = scalar_lea.hbm %s1, %s240
          %s243 = sshll.u32 %s234, 4
          %s244 = int_to_ptr.vmem [resolvable:$true] %s243
          %246 = dma.hbm_to_vmem [thread:$0]  %s241, 32, %s244, %s231
        $region32: #{tpu_custom_call.1} parent=23 // pred_fallthru
          _
      $region24: #{tpu_custom_call.1} parent=5 // pred_fallthru
        _
      %p247 = scmp.le.s32.totalorder 1, %s17
      %p248 = scmp.lt.s32.totalorder %s17, 7
      %p249 = pnand %p247, %p248
      %p250 = pneg %p249
      // Predicated region
      $region33: #{tpu_custom_call.1} parent=5 // pred_check
        _
      $region34: #{tpu_custom_call.1} parent=5 // pred_check_branch
        %252 = sbr.rel (%p249) target = $region36
      $region35: #{tpu_custom_call.1} parent=5 // pred_region
        %s253 = ssub.s32 %s17, 1
        %s254 = sand.u32 %s44, 1
        %s255 = scalar_lea.sflag [#allocation6], %s254
        %s256 = sand.u32 %s44, 1
        %s257 = smul.addr %s256, 128
        %s258 = scalar_lea.vmem [#allocation5], %s257
        // Predicated region
        $region37: #{tpu_custom_call.1} parent=35 // pred_check
          %p259 = pneg %p57
        $region38: #{tpu_custom_call.1} parent=35 // pred_check_branch
          %261 = sbr.rel (%p259) target = $region40
        $region39: #{tpu_custom_call.1} parent=35 // pred_region
          %262 = dma.done %s255, 2048
        $region40: #{tpu_custom_call.1} parent=35 // pred_fallthru
          _
        %s263 = sand.u32 %s72, 1
        %s264 = scalar_lea.sflag [#allocation8], %s263
        %s265 = sand.u32 %s72, 1
        %s266 = smul.addr %s265, 2
        %s267 = scalar_lea.vmem [#allocation7], %s266
        // Predicated region
        $region41: #{tpu_custom_call.1} parent=35 // pred_check
          %p268 = pneg %p85
        $region42: #{tpu_custom_call.1} parent=35 // pred_check_branch
          %270 = sbr.rel (%p268) target = $region44
        $region43: #{tpu_custom_call.1} parent=35 // pred_region
          %271 = dma.done %s264, 32
        $region44: #{tpu_custom_call.1} parent=35 // pred_fallthru
          _
        %s272 = sand.u32 %s44, 1
        %s273 = scalar_lea.sflag [#allocation6], %s272
        %s274 = sand.u32 %s44, 1
        %s275 = smul.addr %s274, 128
        %s276 = scalar_lea.vmem [#allocation5], %s275
        %p277 = pneg %p57
        %p278 = pneg %p54
        %s279 = sand.u32 %s72, 1
        %s280 = scalar_lea.sflag [#allocation8], %s279
        %s281 = sand.u32 %s72, 1
        %s282 = smul.addr %s281, 2
        %s283 = scalar_lea.vmem [#allocation7], %s282
        %p284 = pneg %p85
        %p285 = pneg %p82
        %p286 = pneg %p106
        %p287 = pneg %p103
        %p288 = pneg %p127
        %p289 = pneg %p124
        %p290 = pneg %p153
        %p291 = pneg %p150
        %p292 = scmp.lt.s32.totalorder %s26, 1
        %s293 = scalar_select %p292, %s26, 1
        %s294 = smul.addr %s293, 2
        %s295 = scalar_lea.vmem %s4, %s294
        %s296 = smul.u32 2, %s26
        %s297 = smul.u32 8, %s27
        %p298 = scmp.lt.s32.totalorder %s26, 1
        %s299 = scalar_select %p298, %s26, 1
        %s300 = smul.addr %s299, 2
        %s301 = scalar_lea.vmem %s4, %s300
        %p302 = scmp.eq.s32.totalorder %s27, 0
        // Predicated region
        $region45: #{tpu_custom_call.1} parent=35 // pred_check
          %p303 = pneg %p302
        $region46: #{tpu_custom_call.1} parent=35 // pred_check_branch
          %305 = sbr.rel (%p303) target = $region48
        $region47: #{tpu_custom_call.1} parent=35 // pred_region
          %vm306 = vcmask 1024
          %307 = vst.msk [vmem:[#allocation2] sm:$0x3] %vm306, 0.0
          %308 = vst.msk [vmem:[#allocation3] sm:$0x3] %vm306, 0.0
        $region48: #{tpu_custom_call.1} parent=35 // pred_fallthru
          _
        %v309 = vld [vmem:[%s258] sm:$0xff]
        %v310 = vld [vmem:[%s258 + $0x8] sm:$0xff]
        %v311 = vld [vmem:[%s258 + $0x10] sm:$0xff]
        %v312 = vld [vmem:[%s258 + $0x18] sm:$0xff]
        %v313 = vld [vmem:[%s258 + $0x20] sm:$0xff]
        %v314 = vld [vmem:[%s258 + $0x28] sm:$0xff]
        %v315 = vld [vmem:[%s258 + $0x30] sm:$0xff]
        %v316 = vld [vmem:[%s258 + $0x38] sm:$0xff]
        %v317 = vld [vmem:[%s258 + $0x40] sm:$0xff]
        %v318 = vld [vmem:[%s258 + $0x48] sm:$0xff]
        %v319 = vld [vmem:[%s258 + $0x50] sm:$0xff]
        %v320 = vld [vmem:[%s258 + $0x58] sm:$0xff]
        %v321 = vld [vmem:[%s258 + $0x60] sm:$0xff]
        %v322 = vld [vmem:[%s258 + $0x68] sm:$0xff]
        %v323 = vld [vmem:[%s258 + $0x70] sm:$0xff]
        %v324 = vld [vmem:[%s258 + $0x78] sm:$0xff]
        %v325 = vld [vmem:[%s2] sm:$0x1]
        %v327 = vlaneseq
        %v328 = vshrl.u32 %v327, 7
        %v329 = vsub.s32 0, %v328
        %v330 = vrot.slane %v325, %v329
        %v332 = vmul.f32 %v309, %v330
        %v333 = vmul.f32 %v310, %v330
        %v334 = vmul.f32 %v311, %v330
        %v335 = vmul.f32 %v312, %v330
        %v336 = vmul.f32 %v313, %v330
        %v337 = vmul.f32 %v314, %v330
        %v338 = vmul.f32 %v315, %v330
        %v339 = vmul.f32 %v316, %v330
        %v340 = vmul.f32 %v317, %v330
        %v341 = vmul.f32 %v318, %v330
        %v342 = vmul.f32 %v319, %v330
        %v343 = vmul.f32 %v320, %v330
        %v344 = vmul.f32 %v321, %v330
        %v345 = vmul.f32 %v322, %v330
        %v346 = vmul.f32 %v323, %v330
        %v347 = vmul.f32 %v324, %v330
        %348 = vadd.xlane.f32.xlu0 %v332
        %v349 = vpop.xlane.xlu0 %348
        %350 = vadd.xlane.f32.xlu0 %v333
        %v351 = vpop.xlane.xlu0 %350
        %352 = vadd.xlane.f32.xlu0 %v334
        %v353 = vpop.xlane.xlu0 %352
        %354 = vadd.xlane.f32.xlu0 %v335
        %v355 = vpop.xlane.xlu0 %354
        %356 = vadd.xlane.f32.xlu0 %v336
        %v357 = vpop.xlane.xlu0 %356
        %358 = vadd.xlane.f32.xlu0 %v337
        %v359 = vpop.xlane.xlu0 %358
        %360 = vadd.xlane.f32.xlu0 %v338
        %v361 = vpop.xlane.xlu0 %360
        %362 = vadd.xlane.f32.xlu0 %v339
        %v363 = vpop.xlane.xlu0 %362
        %364 = vadd.xlane.f32.xlu0 %v340
        %v365 = vpop.xlane.xlu0 %364
        %366 = vadd.xlane.f32.xlu0 %v341
        %v367 = vpop.xlane.xlu0 %366
        %368 = vadd.xlane.f32.xlu0 %v342
        %v369 = vpop.xlane.xlu0 %368
        %370 = vadd.xlane.f32.xlu0 %v343
        %v371 = vpop.xlane.xlu0 %370
        %372 = vadd.xlane.f32.xlu0 %v344
        %v373 = vpop.xlane.xlu0 %372
        %374 = vadd.xlane.f32.xlu0 %v345
        %v375 = vpop.xlane.xlu0 %374
        %376 = vadd.xlane.f32.xlu0 %v346
        %v377 = vpop.xlane.xlu0 %376
        %378 = vadd.xlane.f32.xlu0 %v347
        %v379 = vpop.xlane.xlu0 %378
        %v380 = vld [vmem:[%s267] sm:$0x3]
        %v381 = vld [vmem:[#allocation2] sm:$0x3]
        %v398 = vlaneseq
        %v399 = vand.u32 %v398, 127
        %v400 = vlaneseq
        %v401 = vshrl.u32 %v400, 7
        %v402 = vsub.s32 %v399, %v401
        %v403 = vrot.slane %v349, %v402
        %v404 = vadd.s32 %v399, 4294967288
        %v405 = vlaneseq
        %v406 = vshrl.u32 %v405, 7
        %v407 = vsub.s32 %v404, %v406
        %v408 = vrot.slane %v351, %v407
        %vm409 = vcmask 130112
        %v410 = vsel %vm409, %v408, %v403
        %v411 = vadd.s32 %v399, 4294967280
        %v412 = vlaneseq
        %v413 = vshrl.u32 %v412, 7
        %v414 = vsub.s32 %v411, %v413
        %v415 = vrot.slane %v353, %v414
        %vm416 = vcmask 195712
        %v417 = vsel %vm416, %v415, %v410
        %v418 = vadd.s32 %v399, 4294967272
        %v419 = vlaneseq
        %v420 = vshrl.u32 %v419, 7
        %v421 = vsub.s32 %v418, %v420
        %v422 = vrot.slane %v355, %v421
        %vm423 = vcmask 261312
        %v424 = vsel %vm423, %v422, %v417
        %v425 = vadd.s32 %v399, 4294967264
        %v426 = vlaneseq
        %v427 = vshrl.u32 %v426, 7
        %v428 = vsub.s32 %v425, %v427
        %v429 = vrot.slane %v357, %v428
        %vm430 = vcmask 326912
        %v431 = vsel %vm430, %v429, %v424
        %v432 = vadd.s32 %v399, 4294967256
        %v433 = vlaneseq
        %v434 = vshrl.u32 %v433, 7
        %v435 = vsub.s32 %v432, %v434
        %v436 = vrot.slane %v359, %v435
        %vm437 = vcmask 392512
        %v438 = vsel %vm437, %v436, %v431
        %v439 = vadd.s32 %v399, 4294967248
        %v440 = vlaneseq
        %v441 = vshrl.u32 %v440, 7
        %v442 = vsub.s32 %v439, %v441
        %v443 = vrot.slane %v361, %v442
        %vm444 = vcmask 458112
        %v445 = vsel %vm444, %v443, %v438
        %v446 = vadd.s32 %v399, 4294967240
        %v447 = vlaneseq
        %v448 = vshrl.u32 %v447, 7
        %v449 = vsub.s32 %v446, %v448
        %v450 = vrot.slane %v363, %v449
        %vm451 = vcmask 523712
        %v452 = vsel %vm451, %v450, %v445
        %v453 = vlaneseq
        %v454 = vshrl.u32 %v453, 7
        %v455 = vsub.s32 %v399, %v454
        %v456 = vrot.slane %v365, %v455
        %v457 = vlaneseq
        %v458 = vshrl.u32 %v457, 7
        %v459 = vsub.s32 %v404, %v458
        %v460 = vrot.slane %v367, %v459
        %v461 = vsel %vm409, %v460, %v456
        %v462 = vlaneseq
        %v463 = vshrl.u32 %v462, 7
        %v464 = vsub.s32 %v411, %v463
        %v465 = vrot.slane %v369, %v464
        %v466 = vsel %vm416, %v465, %v461
        %v467 = vlaneseq
        %v468 = vshrl.u32 %v467, 7
        %v469 = vsub.s32 %v418, %v468
        %v470 = vrot.slane %v371, %v469
        %v471 = vsel %vm423, %v470, %v466
        %v472 = vlaneseq
        %v473 = vshrl.u32 %v472, 7
        %v474 = vsub.s32 %v425, %v473
        %v475 = vrot.slane %v373, %v474
        %v476 = vsel %vm430, %v475, %v471
        %v477 = vlaneseq
        %v478 = vshrl.u32 %v477, 7
        %v479 = vsub.s32 %v432, %v478
        %v480 = vrot.slane %v375, %v479
        %v481 = vsel %vm437, %v480, %v476
        %v482 = vlaneseq
        %v483 = vshrl.u32 %v482, 7
        %v484 = vsub.s32 %v439, %v483
        %v485 = vrot.slane %v377, %v484
        %v486 = vsel %vm444, %v485, %v481
        %v487 = vlaneseq
        %v488 = vshrl.u32 %v487, 7
        %v489 = vsub.s32 %v446, %v488
        %v490 = vrot.slane %v379, %v489
        %v491 = vsel %vm451, %v490, %v486
        %vm492 = vcmask 1041409
        %v493 = vsel %vm492, %v491, %v452
        %v495 = vmul.f32 %v380, %v493
        %vm496 = vcmask 517120
        %v497 = vsel %vm496, %v495, 0.0
        %498 = vadd.xlane.f32.xlu0 %v497
        %v499 = vpop.xlane.xlu0 %498
        %v500 = vadd.f32 %v381, %v499
        %vm501 = vcmask 1024
        %502 = vst.msk [vmem:[#allocation2] sm:$0x3] %vm501, %v500
        %v503 = vld [vmem:[#allocation3] sm:$0x3]
        %v504 = vsel %vm496, %v380, 0.0
        %505 = vadd.xlane.f32.xlu0 %v504
        %v506 = vpop.xlane.xlu0 %505
        %v507 = vadd.f32 %v503, %v506
        %508 = vst.msk [vmem:[#allocation3] sm:$0x3] %vm501, %v507
        %p509 = scmp.eq.s32.totalorder %s27, 2
        // Predicated region
        $region49: #{tpu_custom_call.1} parent=35 // pred_check
          %p510 = pneg %p509
        $region50: #{tpu_custom_call.1} parent=35 // pred_check_branch
          %512 = sbr.rel (%p510) target = $region52
        $region51: #{tpu_custom_call.1} parent=35 // pred_region
          %s513 = sld [smem:[#allocation4]]
          %v514 = vld [vmem:[#allocation3] sm:$0x3]
          %v515 = vld [vmem:[#allocation2] sm:$0x3]
          %v516 = vstv %s513
          %v517 = vmul.f32 %v516, %v514
          %v518 = vadd.f32 %v515, %v517
          %v519 = vrcp.pop %v514
          %v520 = vmul.f32 %v518, %v519
          %v521 = vxor.u32 %v520, 2147483648
          %v522 = vmul.f32 %v521, 1.442695
          %v523 = vpow.pop %v522
          %v524 = vadd.f32 %v523, 1.0
          %v525 = vrcp.pop %v524
          %v526 = vmul.f32 1.0, %v525
          %527 = vst.msk [vmem:[%s301] sm:$0x3] %vm501, %v526
        $region52: #{tpu_custom_call.1} parent=35 // pred_fallthru
          _
        %p528 = scmp.lt.s32.totalorder %s26, 1
        %s529 = scalar_select %p528, %s26, 1
        %s530 = smul.addr %s529, 2
        %s531 = scalar_lea.vmem %s4, %s530
        // Predicated region
        $region53: #{tpu_custom_call.1} parent=35 // pred_check
          %p532 = pneg %p150
        $region54: #{tpu_custom_call.1} parent=35 // pred_check_branch
          %534 = sbr.rel (%p532) target = $region56
        $region55: #{tpu_custom_call.1} parent=35 // pred_region
          _
        $region56: #{tpu_custom_call.1} parent=35 // pred_fallthru
          _
      $region36: #{tpu_custom_call.1} parent=5 // pred_fallthru
        _
      %p535 = scmp.le.s32.totalorder 2, %s17
      // Predicated region
      $region57: #{tpu_custom_call.1} parent=5 // pred_check
        %p536 = pneg %p535
      $region58: #{tpu_custom_call.1} parent=5 // pred_check_branch
        %538 = sbr.rel (%p536) target = $region60
      $region59: #{tpu_custom_call.1} parent=5 // pred_region
        %s539 = ssub.s32 %s17, 2
        // Predicated region
        $region61: #{tpu_custom_call.1} parent=59 // pred_check
          %p540 = pneg %p156
        $region62: #{tpu_custom_call.1} parent=59 // pred_check_branch
          %542 = sbr.rel (%p540) target = $region64
        $region63: #{tpu_custom_call.1} parent=59 // pred_region
          %p543 = scmp.lt.s32.totalorder %s28, 1
          %s544 = scalar_select %p543, %s28, 1
          %s545 = smul.addr %s544, 2
          %s546 = scalar_lea.vmem %s4, %s545
        $region64: #{tpu_custom_call.1} parent=59 // pred_fallthru
          _
      $region60: #{tpu_custom_call.1} parent=5 // pred_fallthru
        _
    $region6: #{tpu_custom_call.1} parent=1 // loop_footer
      %s21 = sadd.s32 1, %s17
    $region7: #{tpu_custom_call.1} parent=1 // loop_footer_branch
      %16 = sbr.rel target = $region3
    $region8: #{tpu_custom_call.1} parent=1 // loop_exit
      _
    %547 = vsyncpa [#allocation6], 1
    %s548 = scalar_lea.sflag [#allocation6], 1
    %549 = vsyncpa %s548, 1
    %550 = vsyncpa [#allocation8], 1
    %s551 = scalar_lea.sflag [#allocation8], 1
    %552 = vsyncpa %s551, 1

</llo_original>
